<compile_context>
chip_gen: v5e
topology: v5e:2x2
jax: 0.10.0
libtpu: 0.0.40
codegen_flags: <defaults>
</compile_context>

<pallas_src>
import functools

import jax
import jax.numpy as jnp
from jax.experimental import pallas as pl
from jax.experimental.pallas import tpu as pltpu

_LANE = 128


def _round_up(n, m):
    return ((n + m - 1) // m) * m


def _chip_info():
    """Best-effort chip introspection with safe fallbacks."""
    kind = ""
    try:
        kind = jax.devices()[0].device_kind.lower()
    except Exception:
        pass
    num_tc = 2 if any(g in kind for g in ("v7", "v4", "v5p")) else 1
    try:
        vmem_bytes = int(pltpu.get_tpu_info().vmem_capacity_bytes)
    except Exception:
        vmem_bytes = (64 << 20) if "v7" in kind else (128 << 20)
    has_bf16_vpu = ("v6" in kind) or ("v7" in kind)
    return dict(kind=kind, num_tc=num_tc, vmem_bytes=vmem_bytes,
                has_bf16_vpu=has_bf16_vpu)


def _gelu_erf(v):
    # torch.nn.GELU() default = exact erf formulation.
    return 0.5 * v * (1.0 + jax.lax.erf(v * jnp.asarray(0.7071067811865476, v.dtype)))


def _gelu_tanh(v):
    # tanh approximation -> transcendental goes to the EUP slot instead of a long
    # erf polynomial on the 4-wide VALU (the binding unit when K/N are small).
    c = jnp.asarray(0.7978845608028654, v.dtype)  # sqrt(2/pi)
    return 0.5 * v * (1.0 + jnp.tanh(c * (v + 0.044715 * (v * v * v))))


def residual_mlp_kernel(x_ref, w1_ref, b1_ref, w2_ref, b2_ref, w3_ref, b3_ref,
                        gamma_ref, beta_ref, o_ref, *,
                        eps, approx_gelu, act_dtype, o_valid):
    gelu = _gelu_tanh if approx_gelu else _gelu_erf
    wdt = w1_ref.dtype      # MXU operand dtype (bf16 on the fast path, f32 otherwise)
    adt = act_dtype         # bias-add / GELU dtype (bf16 only on v6e/v7x fast path)

    # Layers 1..3: MXU accumulates in f32; bias/activation math runs in `adt`.
    h = jnp.dot(x_ref[...].astype(wdt), w1_ref[...],
                preferred_element_type=jnp.float32)
    h = gelu(h.astype(adt) + b1_ref[...])
    h = jnp.dot(h.astype(wdt), w2_ref[...],
                preferred_element_type=jnp.float32)
    h = gelu(h.astype(adt) + b2_ref[...])
    h = jnp.dot(h.astype(wdt), w3_ref[...],
                preferred_element_type=jnp.float32)
    h = gelu(h.astype(adt) + b3_ref[...])

    # Residual add: re-read the VMEM-resident x tile here (cheap vld, short live range).
    # LayerNorm in f32 over the real features only: padded lanes are exact zeros, so the
    # sum just needs a 1/o_valid scale plus a mask on the centered term.
    y = h.astype(jnp.float32) + x_ref[...].astype(jnp.float32)
    inv_n = jnp.float32(1.0 / o_valid)
    mean = jnp.sum(y, axis=-1, keepdims=True) * inv_n
    cent = y - mean
    if o_valid != y.shape[-1]:
        lane = jax.lax.broadcasted_iota(jnp.int32, y.shape, y.ndim - 1)
        cent = jnp.where(lane < o_valid, cent, 0.0)
    var = jnp.sum(cent * cent, axis=-1, keepdims=True) * inv_n
    y_hat = cent * jax.lax.rsqrt(var + eps)
    o_ref[...] = (y_hat * gamma_ref[...] + beta_ref[...]).astype(o_ref.dtype)


def prepare_params(params, *, mxu_dtype=None, approx_gelu=None, pad_lanes=True,
                   chip=None):
    """One-time setup: cast + zero-pad parameters.  Call once, reuse every forward.

    params: dict of pre-transposed weights w1[D,H], w2[H,H], w3[H,O], biases b*[1,*],
            LayerNorm gamma/beta [1,O].  Returns (prepared_params, meta).
    """
    chip = chip or _chip_info()
    if mxu_dtype is None:
        mxu_dtype = jnp.bfloat16        # bf16 MXU operands on all generations
    if approx_gelu is None:
        approx_gelu = True              # tanh-GELU -> EUP slot
    act_dtype = (jnp.bfloat16
                 if (mxu_dtype == jnp.bfloat16 and chip["has_bf16_vpu"])
                 else jnp.float32)

    D, H = params["w1"].shape
    O = params["w3"].shape[1]
    if pad_lanes:
        Dp, Hp, Op = (_round_up(n, _LANE) for n in (D, H, O))
    else:
        Dp, Hp, Op = D, H, O

    def cast_pad(a, rows, cols, dtype):
        a = a.astype(dtype)
        return jnp.pad(a, ((0, rows - a.shape[0]), (0, cols - a.shape[1])))

    prepped = dict(
        w1=cast_pad(params["w1"], Dp, Hp, mxu_dtype),
        b1=cast_pad(params["b1"], 1, Hp, act_dtype),
        w2=cast_pad(params["w2"], Hp, Hp, mxu_dtype),
        b2=cast_pad(params["b2"], 1, Hp, act_dtype),
        w3=cast_pad(params["w3"], Hp, Op, mxu_dtype),
        b3=cast_pad(params["b3"], 1, Op, act_dtype),
        gamma=cast_pad(params["gamma"], 1, Op, jnp.float32),
        beta=cast_pad(params["beta"], 1, Op, jnp.float32),
    )
    meta = dict(D=D, H=H, O=O, Dp=Dp, Hp=Hp, Op=Op,
                mxu_dtype=mxu_dtype, act_dtype=act_dtype,
                approx_gelu=bool(approx_gelu), chip=chip)
    return prepped, meta


def _pick_block_rows(batch, num_tc, max_rows):
    max_rows = max(8, min(int(max_rows), 512))
    if batch <= 8:
        return batch
    if num_tc <= 1:
        # Single TensorCore: the grid is a serial loop -> fewest, largest steps.
        if batch <= max_rows:
            return batch
        return max(8, (min(max_rows, batch) // 8) * 8)
    # 2 TensorCores (parallel grid axis): even number of near-equal row blocks.
    steps = 2
    while True:
        bm = _round_up(pl.cdiv(batch, steps), 8)
        if bm <= max_rows or bm <= 8:
            return min(bm, batch)
        steps += 2


def residual_mlp(x, params, meta=None, *, block_rows=None, eps=1e-5,
                 single_buffer_weights=True, vmem_limit_bytes=None):
    """x: [B, D]; params/meta from prepare_params() (prepare once, reuse per call)."""
    if meta is None:
        # Convenience path: pays cast/pad every call -- prefer calling prepare_params().
        params, meta = prepare_params(params)

    B, D = x.shape
    assert D == meta["D"], "x feature dim does not match prepared params"
    assert meta["O"] == meta["D"], "residual branch requires output_dim == input_dim"
    Dp, Hp, Op, O = meta["Dp"], meta["Hp"], meta["Op"], meta["O"]
    chip = meta["chip"]

    x_in = x if Dp == D else jnp.pad(x, ((0, 0), (0, Dp - D)))

    itemsize = lambda a: a.dtype.itemsize
    const_keys = ("w1", "b1", "w2", "b2", "w3", "b3", "gamma", "beta")
    wbytes = sum(int(params[k].size) * itemsize(params[k]) for k in const_keys)
    if not single_buffer_weights:
        wbytes *= 2
    row_bytes = (2 * Dp * itemsize(x_in)       # double-buffered x tile
                 + 2 * Op * itemsize(x)        # double-buffered output tile
                 + 2 * max(Hp, Op) * 4)        # ~2 live f32 intermediates per row

    budget = chip["vmem_bytes"] - (8 << 20)
    avail = budget - wbytes
    max_rows_fit = max(8, (avail // row_bytes) // 8 * 8) if avail > 0 else 8
    if block_rows is None:
        block_rows = _pick_block_rows(B, chip["num_tc"], max_rows_fit)
    grid = (pl.cdiv(B, block_rows),)

    if vmem_limit_bytes is None:
        vmem_limit_bytes = int(min(chip["vmem_bytes"] - (2 << 20),
                                   max(32 << 20,
                                       wbytes + 2 * block_rows * row_bytes + (8 << 20))))

    cost = pl.CostEstimate(
        flops=int(2 * B * (Dp * Hp + Hp * Hp + Hp * Op)),
        transcendentals=int(B * (2 * Hp + Op)),
        bytes_accessed=int(B * Dp * itemsize(x_in) + B * Op * itemsize(x) + wbytes),
    )

    # Constant operands: index_map always (0, 0) -> DMA'd once and resident across the
    # grid; a single VMEM buffer suffices (no prefetch needed for a revisited block).
    if single_buffer_weights:
        const_spec = lambda shape: pl.BlockSpec(shape, lambda i: (0, 0),
                                                pipeline_mode=pl.Buffered(1))
    else:
        const_spec = lambda shape: pl.BlockSpec(shape, lambda i: (0, 0))

    kernel = functools.partial(residual_mlp_kernel, eps=eps,
                               approx_gelu=meta["approx_gelu"],
                               act_dtype=meta["act_dtype"], o_valid=O)
    out = pl.pallas_call(
        kernel,
        out_shape=jax.ShapeDtypeStruct((B, Op), x.dtype),
        grid=grid,
        in_specs=[
            pl.BlockSpec((block_rows, Dp), lambda i: (i, 0)),   # x row tile
            const_spec((Dp, Hp)), const_spec((1, Hp)),          # layer 1
            const_spec((Hp, Hp)), const_spec((1, Hp)),          # layer 2
            const_spec((Hp, Op)), const_spec((1, Op)),          # layer 3
            const_spec((1, Op)), const_spec((1, Op)),           # LN gamma / beta
        ],
        out_specs=pl.BlockSpec((block_rows, Op), lambda i: (i, 0)),
        compiler_params=pltpu.CompilerParams(
            dimension_semantics=("parallel",),
            vmem_limit_bytes=vmem_limit_bytes),
        cost_estimate=cost,
    )(x_in, params["w1"], params["b1"], params["w2"], params["b2"],
      params["w3"], params["b3"], params["gamma"], params["beta"])

    return out if Op == O else out[:, :O]


def make_params(key, input_dim, hidden_f, output_dim, dtype=jnp.float32):
    ks = jax.random.split(key, 6)

    def linear(kw, kb, fan_in, fan_out):
        bound = 1.0 / (fan_in ** 0.5)
        w = jax.random.uniform(kw, (fan_in, fan_out), dtype, -bound, bound)
        b = jax.random.uniform(kb, (1, fan_out), dtype, -bound, bound)
        return w, b

    w1, b1 = linear(ks[0], ks[1], input_dim, hidden_f)
    w2, b2 = linear(ks[2], ks[3], hidden_f, hidden_f)
    w3, b3 = linear(ks[4], ks[5], hidden_f, output_dim)
    return dict(w1=w1, b1=b1, w2=w2, b2=b2, w3=w3, b3=b3,
                gamma=jnp.ones((1, output_dim), dtype),
                beta=jnp.zeros((1, output_dim), dtype))


def residual_mlp_reference(x, p, eps=1e-5):
    g = lambda v: 0.5 * v * (1.0 + jax.lax.erf(v * 0.7071067811865476))
    h = g(x @ p["w1"] + p["b1"])
    h = g(h @ p["w2"] + p["b2"])
    h = g(h @ p["w3"] + p["b3"])
    y = h + x
    mean = jnp.mean(y, -1, keepdims=True)
    var = jnp.mean((y - mean) ** 2, -1, keepdims=True)
    return (y - mean) * jax.lax.rsqrt(var + eps) * p["gamma"] + p["beta"]


if __name__ == "__main__":
    key = jax.random.PRNGKey(0)
    kx, kp = jax.random.split(key)

    B, input_dim, hidden_f, output_dim = 16, 32, 32, 32
    x = jax.random.normal(kx, (B, input_dim), jnp.float32)
    params = make_params(kp, input_dim, hidden_f, output_dim)
    ref = residual_mlp_reference(x, params)

    # Accuracy mode: f32 MXU operands + exact erf GELU -> matches torch eval forward.
    prepped_exact, meta_exact = prepare_params(
        params, mxu_dtype=jnp.float32, approx_gelu=False)
    out = jax.block_until_ready(residual_mlp(x, prepped_exact, meta_exact))
    assert out.shape == (B, output_dim)
    assert jnp.allclose(out, ref, atol=2e-3, rtol=2e-3)

    # Default fast path: bf16 MXU operands + tanh-GELU (bf16 activations on v6e/v7x).
    prepped_fast, meta_fast = prepare_params(params)
    out_fast = jax.block_until_ready(residual_mlp(x, prepped_fast, meta_fast))
    assert out_fast.shape == (B, output_dim)
    assert jnp.allclose(out_fast, ref, atol=2e-1, rtol=2e-1)

    print("KERNEL_OK")
</pallas_src>

<mosaic_0001>
module attributes {stable_mosaic.version = 11 : i64} {
  func.func @residual_mlp_kernel(%arg0: i32, %arg1: memref<16x128xf32, #tpu.memory_space<vmem>>, %arg2: memref<128x128xf32, #tpu.memory_space<vmem>>, %arg3: memref<1x128xf32, #tpu.memory_space<vmem>>, %arg4: memref<128x128xf32, #tpu.memory_space<vmem>>, %arg5: memref<1x128xf32, #tpu.memory_space<vmem>>, %arg6: memref<128x128xf32, #tpu.memory_space<vmem>>, %arg7: memref<1x128xf32, #tpu.memory_space<vmem>>, %arg8: memref<1x128xf32, #tpu.memory_space<vmem>>, %arg9: memref<1x128xf32, #tpu.memory_space<vmem>>, %arg10: memref<16x128xf32, #tpu.memory_space<vmem>>) attributes {dimension_semantics = [#tpu.dimension_semantics<parallel>], iteration_bounds = array<i64: 1>, scalar_prefetch = 0 : i64, scratch_operands = 0 : i64, tpu.core_type = #tpu.core_type<tc>, window_params = [{transform_indices = @transform_0, window_bounds = array<i64: 16, 128>}, {pipeline_mode = #tpu.pipeline_mode<synchronous>, transform_indices = @transform_1, window_bounds = array<i64: 128, 128>}, {pipeline_mode = #tpu.pipeline_mode<synchronous>, transform_indices = @transform_2, window_bounds = array<i64: 1, 128>}, {pipeline_mode = #tpu.pipeline_mode<synchronous>, transform_indices = @transform_3, window_bounds = array<i64: 128, 128>}, {pipeline_mode = #tpu.pipeline_mode<synchronous>, transform_indices = @transform_4, window_bounds = array<i64: 1, 128>}, {pipeline_mode = #tpu.pipeline_mode<synchronous>, transform_indices = @transform_5, window_bounds = array<i64: 128, 128>}, {pipeline_mode = #tpu.pipeline_mode<synchronous>, transform_indices = @transform_6, window_bounds = array<i64: 1, 128>}, {pipeline_mode = #tpu.pipeline_mode<synchronous>, transform_indices = @transform_7, window_bounds = array<i64: 1, 128>}, {pipeline_mode = #tpu.pipeline_mode<synchronous>, transform_indices = @transform_8, window_bounds = array<i64: 1, 128>}, {transform_indices = @transform_9, window_bounds = array<i64: 16, 128>}]} {
    %c0 = arith.constant 0 : index
    %c0_0 = arith.constant 0 : index
    %0 = vector.load %arg1[%c0, %c0_0] : memref<16x128xf32, #tpu.memory_space<vmem>>, vector<16x128xf32>
    %c0_1 = arith.constant 0 : index
    %c0_2 = arith.constant 0 : index
    %1 = vector.load %arg2[%c0_1, %c0_2] : memref<128x128xf32, #tpu.memory_space<vmem>>, vector<128x128xf32>
    %cst = arith.constant dense<0.000000e+00> : vector<16x128xf32>
    %2 = tpu.matmul %0, %1, %cst {dimension_numbers = #tpu.dot_dimension_numbers<[1], [0], [0], [1], [0, 0, 1, 1], [], []>} : vector<16x128xf32>, vector<128x128xf32>, vector<16x128xf32> -> vector<16x128xf32>
    %c0_3 = arith.constant 0 : index
    %c0_4 = arith.constant 0 : index
    %3 = vector.load %arg3[%c0_3, %c0_4] : memref<1x128xf32, #tpu.memory_space<vmem>>, vector<1x128xf32>
    %4 = vector.broadcast %3 : vector<1x128xf32> to vector<16x128xf32>
    %5 = arith.addf %2, %4 : vector<16x128xf32>
    %cst_5 = arith.constant 5.000000e-01 : f32
    %6 = vector.broadcast %cst_5 : f32 to vector<16x128xf32>
    %7 = arith.mulf %6, %5 : vector<16x128xf32>
    %cst_6 = arith.constant 0.707106769 : f32
    %8 = vector.broadcast %cst_6 : f32 to vector<16x128xf32>
    %9 = arith.mulf %5, %8 : vector<16x128xf32>
    %10 = math.erf %9 : vector<16x128xf32>
    %cst_7 = arith.constant 1.000000e+00 : f32
    %11 = vector.broadcast %cst_7 : f32 to vector<16x128xf32>
    %12 = arith.addf %11, %10 : vector<16x128xf32>
    %13 = arith.mulf %7, %12 : vector<16x128xf32>
    %c0_8 = arith.constant 0 : index
    %c0_9 = arith.constant 0 : index
    %14 = vector.load %arg4[%c0_8, %c0_9] : memref<128x128xf32, #tpu.memory_space<vmem>>, vector<128x128xf32>
    %cst_10 = arith.constant dense<0.000000e+00> : vector<16x128xf32>
    %15 = tpu.matmul %13, %14, %cst_10 {dimension_numbers = #tpu.dot_dimension_numbers<[1], [0], [0], [1], [0, 0, 1, 1], [], []>} : vector<16x128xf32>, vector<128x128xf32>, vector<16x128xf32> -> vector<16x128xf32>
    %c0_11 = arith.constant 0 : index
    %c0_12 = arith.constant 0 : index
    %16 = vector.load %arg5[%c0_11, %c0_12] : memref<1x128xf32, #tpu.memory_space<vmem>>, vector<1x128xf32>
    %17 = vector.broadcast %16 : vector<1x128xf32> to vector<16x128xf32>
    %18 = arith.addf %15, %17 : vector<16x128xf32>
    %cst_13 = arith.constant 5.000000e-01 : f32
    %19 = vector.broadcast %cst_13 : f32 to vector<16x128xf32>
    %20 = arith.mulf %19, %18 : vector<16x128xf32>
    %cst_14 = arith.constant 0.707106769 : f32
    %21 = vector.broadcast %cst_14 : f32 to vector<16x128xf32>
    %22 = arith.mulf %18, %21 : vector<16x128xf32>
    %23 = math.erf %22 : vector<16x128xf32>
    %cst_15 = arith.constant 1.000000e+00 : f32
    %24 = vector.broadcast %cst_15 : f32 to vector<16x128xf32>
    %25 = arith.addf %24, %23 : vector<16x128xf32>
    %26 = arith.mulf %20, %25 : vector<16x128xf32>
    %c0_16 = arith.constant 0 : index
    %c0_17 = arith.constant 0 : index
    %27 = vector.load %arg6[%c0_16, %c0_17] : memref<128x128xf32, #tpu.memory_space<vmem>>, vector<128x128xf32>
    %cst_18 = arith.constant dense<0.000000e+00> : vector<16x128xf32>
    %28 = tpu.matmul %26, %27, %cst_18 {dimension_numbers = #tpu.dot_dimension_numbers<[1], [0], [0], [1], [0, 0, 1, 1], [], []>} : vector<16x128xf32>, vector<128x128xf32>, vector<16x128xf32> -> vector<16x128xf32>
    %c0_19 = arith.constant 0 : index
    %c0_20 = arith.constant 0 : index
    %29 = vector.load %arg7[%c0_19, %c0_20] : memref<1x128xf32, #tpu.memory_space<vmem>>, vector<1x128xf32>
    %30 = vector.broadcast %29 : vector<1x128xf32> to vector<16x128xf32>
    %31 = arith.addf %28, %30 : vector<16x128xf32>
    %cst_21 = arith.constant 5.000000e-01 : f32
    %32 = vector.broadcast %cst_21 : f32 to vector<16x128xf32>
    %33 = arith.mulf %32, %31 : vector<16x128xf32>
    %cst_22 = arith.constant 0.707106769 : f32
    %34 = vector.broadcast %cst_22 : f32 to vector<16x128xf32>
    %35 = arith.mulf %31, %34 : vector<16x128xf32>
    %36 = math.erf %35 : vector<16x128xf32>
    %cst_23 = arith.constant 1.000000e+00 : f32
    %37 = vector.broadcast %cst_23 : f32 to vector<16x128xf32>
    %38 = arith.addf %37, %36 : vector<16x128xf32>
    %39 = arith.mulf %33, %38 : vector<16x128xf32>
    %c0_24 = arith.constant 0 : index
    %c0_25 = arith.constant 0 : index
    %40 = vector.load %arg1[%c0_24, %c0_25] : memref<16x128xf32, #tpu.memory_space<vmem>>, vector<16x128xf32>
    %41 = arith.addf %39, %40 : vector<16x128xf32>
    %cst_26 = arith.constant dense<0.000000e+00> : vector<16xf32>
    %42 = vector.multi_reduction <add>, %41, %cst_26 [1] : vector<16x128xf32> to vector<16xf32>
    %43 = vector.shape_cast %42 : vector<16xf32> to vector<16x1xf32>
    %cst_27 = arith.constant 3.125000e-02 : f32
    %44 = vector.broadcast %cst_27 : f32 to vector<16x1xf32>
    %45 = arith.mulf %43, %44 : vector<16x1xf32>
    %46 = vector.broadcast %45 : vector<16x1xf32> to vector<16x128xf32>
    %47 = arith.subf %41, %46 : vector<16x128xf32>
    %48 = tpu.iota {dimensions = array<i32: 1>} : vector<16x128xi32>
    %c32_i32 = arith.constant 32 : i32
    %49 = vector.broadcast %c32_i32 : i32 to vector<16x128xi32>
    %50 = arith.cmpi slt, %48, %49 : vector<16x128xi32>
    %cst_28 = arith.constant 0.000000e+00 : f32
    %51 = vector.broadcast %cst_28 : f32 to vector<16x128xf32>
    %52 = arith.select %50, %47, %51 : vector<16x128xi1>, vector<16x128xf32>
    %53 = arith.mulf %52, %52 : vector<16x128xf32>
    %cst_29 = arith.constant dense<0.000000e+00> : vector<16xf32>
    %54 = vector.multi_reduction <add>, %53, %cst_29 [1] : vector<16x128xf32> to vector<16xf32>
    %55 = vector.shape_cast %54 : vector<16xf32> to vector<16x1xf32>
    %cst_30 = arith.constant 3.125000e-02 : f32
    %56 = vector.broadcast %cst_30 : f32 to vector<16x1xf32>
    %57 = arith.mulf %55, %56 : vector<16x1xf32>
    %cst_31 = arith.constant 9.99999974E-6 : f32
    %58 = vector.broadcast %cst_31 : f32 to vector<16x1xf32>
    %59 = arith.addf %57, %58 : vector<16x1xf32>
    %60 = math.rsqrt %59 : vector<16x1xf32>
    %61 = vector.broadcast %60 : vector<16x1xf32> to vector<16x128xf32>
    %62 = arith.mulf %52, %61 : vector<16x128xf32>
    %c0_32 = arith.constant 0 : index
    %c0_33 = arith.constant 0 : index
    %63 = vector.load %arg8[%c0_32, %c0_33] : memref<1x128xf32, #tpu.memory_space<vmem>>, vector<1x128xf32>
    %64 = vector.broadcast %63 : vector<1x128xf32> to vector<16x128xf32>
    %65 = arith.mulf %62, %64 : vector<16x128xf32>
    %c0_34 = arith.constant 0 : index
    %c0_35 = arith.constant 0 : index
    %66 = vector.load %arg9[%c0_34, %c0_35] : memref<1x128xf32, #tpu.memory_space<vmem>>, vector<1x128xf32>
    %67 = vector.broadcast %66 : vector<1x128xf32> to vector<16x128xf32>
    %68 = arith.addf %65, %67 : vector<16x128xf32>
    %c0_36 = arith.constant 0 : index
    %c0_37 = arith.constant 0 : index
    %69 = vector.load %arg10[%c0_36, %c0_37] : memref<16x128xf32, #tpu.memory_space<vmem>>, vector<16x128xf32>
    tpu.vector_store %arg10[%c0_36, %c0_37], %68 {strides = array<i32>} : memref<16x128xf32, #tpu.memory_space<vmem>>, vector<16x128xf32>,
    return
  }
  func.func @transform_0(%arg0: i32) -> (i32, i32) {
    %c0_i32 = arith.constant 0 : i32
    %c0_i32_0 = arith.constant 0 : i32
    return %arg0, %c0_i32 : i32, i32
  }
  func.func @transform_1(%arg0: i32) -> (i32, i32) {
    %c0_i32 = arith.constant 0 : i32
    %c0_i32_0 = arith.constant 0 : i32
    %c0_i32_1 = arith.constant 0 : i32
    return %c0_i32, %c0_i32_0 : i32, i32
  }
  func.func @transform_2(%arg0: i32) -> (i32, i32) {
    %c0_i32 = arith.constant 0 : i32
    %c0_i32_0 = arith.constant 0 : i32
    %c0_i32_1 = arith.constant 0 : i32
    return %c0_i32, %c0_i32_0 : i32, i32
  }
  func.func @transform_3(%arg0: i32) -> (i32, i32) {
    %c0_i32 = arith.constant 0 : i32
    %c0_i32_0 = arith.constant 0 : i32
    %c0_i32_1 = arith.constant 0 : i32
    return %c0_i32, %c0_i32_0 : i32, i32
  }
  func.func @transform_4(%arg0: i32) -> (i32, i32) {
    %c0_i32 = arith.constant 0 : i32
    %c0_i32_0 = arith.constant 0 : i32
    %c0_i32_1 = arith.constant 0 : i32
    return %c0_i32, %c0_i32_0 : i32, i32
  }
  func.func @transform_5(%arg0: i32) -> (i32, i32) {
    %c0_i32 = arith.constant 0 : i32
    %c0_i32_0 = arith.constant 0 : i32
    %c0_i32_1 = arith.constant 0 : i32
    return %c0_i32, %c0_i32_0 : i32, i32
  }
  func.func @transform_6(%arg0: i32) -> (i32, i32) {
    %c0_i32 = arith.constant 0 : i32
    %c0_i32_0 = arith.constant 0 : i32
    %c0_i32_1 = arith.constant 0 : i32
    return %c0_i32, %c0_i32_0 : i32, i32
  }
  func.func @transform_7(%arg0: i32) -> (i32, i32) {
    %c0_i32 = arith.constant 0 : i32
    %c0_i32_0 = arith.constant 0 : i32
    %c0_i32_1 = arith.constant 0 : i32
    return %c0_i32, %c0_i32_0 : i32, i32
  }
  func.func @transform_8(%arg0: i32) -> (i32, i32) {
    %c0_i32 = arith.constant 0 : i32
    %c0_i32_0 = arith.constant 0 : i32
    %c0_i32_1 = arith.constant 0 : i32
    return %c0_i32, %c0_i32_0 : i32, i32
  }
  func.func @transform_9(%arg0: i32) -> (i32, i32) {
    %c0_i32 = arith.constant 0 : i32
    %c0_i32_0 = arith.constant 0 : i32
    return %arg0, %c0_i32 : i32, i32
  }
}

</mosaic_0001>

<llo_original>
// kernel: tpu_custom_call.1
$region0: #{tpu_custom_call.1}
  #allocation0 [shape = 'u32[]', space=smem, size = 0x4, offset = 0x4, fixed_abs, tag = 'smem constant byte address 0x4 - core index']
  #allocation1 [shape = 'u32[72,128]{1,0:T(1,128)}', space=vmem, size = 0x9000, scoped, tag = 'internal scratch']
  %s0 = inlined_call_operand.hbm [shape: f32[16,128], index: 0, kind: input, shape index: {}]
  %s1 = inlined_call_operand.hbm [shape: f32[128,128], index: 1, kind: input, shape index: {}]
  %s2 = inlined_call_operand.vmem [shape: f32[1,128], index: 2, kind: input, shape index: {}]
  %s3 = inlined_call_operand.hbm [shape: f32[128,128], index: 3, kind: input, shape index: {}]
  %s4 = inlined_call_operand.vmem [shape: f32[1,128], index: 4, kind: input, shape index: {}]
  %s5 = inlined_call_operand.hbm [shape: f32[128,128], index: 5, kind: input, shape index: {}]
  %s6 = inlined_call_operand.vmem [shape: f32[1,128], index: 6, kind: input, shape index: {}]
  %s7 = inlined_call_operand.vmem [shape: f32[1,128], index: 7, kind: input, shape index: {}]
  %s8 = inlined_call_operand.vmem [shape: f32[1,128], index: 8, kind: input, shape index: {}]
  %s9 = inlined_call_operand.hbm [shape: f32[16,128], index: 9, kind: output, shape index: {}]
  %s10 = sld [smem:[#allocation0]]
  $region62: #{tpu_custom_call.1} parent=0
    _
  %s12 = ssub.s32 1, %s10
  %s13 = scalar_select 0, %s12, %s10
  $region1: #{tpu_custom_call.1} parent=0
    #allocation2 [shape = 'u8[8192]{0}', space=vmem, size = 0x2000, scoped, tag = 'input window, operand 0, single buffered']
    #allocation3 [shape = 's32[1]{0}', space=sflag, size = 0x4, scoped, tag = 'scoped memory for tpu_custom_call.1']
    #allocation4 [shape = 's32[1]{0}', space=sflag, size = 0x4, scoped, tag = 'scoped memory for tpu_custom_call.1']
    #allocation5 [shape = 'u8[65536]{0}', space=vmem, size = 0x10000, scoped, tag = 'input window, operand 1, single buffered']
    #allocation6 [shape = 's32[1]{0}', space=sflag, size = 0x4, scoped, tag = 'scoped memory for tpu_custom_call.1']
    #allocation7 [shape = 'u8[65536]{0}', space=vmem, size = 0x10000, scoped, tag = 'input window, operand 3, single buffered']
    #allocation8 [shape = 'u8[65536]{0}', space=vmem, size = 0x10000, scoped, tag = 'input window, operand 5, single buffered']
    #allocation9 [shape = 's32[1]{0}', space=sflag, size = 0x4, scoped, tag = 'scoped memory for tpu_custom_call.1']
    #allocation10 [shape = 'u8[8192]{0}', space=vmem, size = 0x2000, scoped, tag = 'output window, operand 0, single buffered']
    %14 = vsyncpa [#allocation3], 0
    %15 = vsyncpa [#allocation6], 0
    %16 = vsyncpa [#allocation9], 0
    %17 = vsyncpa [#allocation4], 0
    // Predicated region
    $region2: #{tpu_custom_call.1} parent=1 // pred_check
      _
    $region3: #{tpu_custom_call.1} parent=1 // pred_check_branch
      %19 = sbr.rel (0) target = $region5
    $region4: #{tpu_custom_call.1} parent=1 // pred_region
      %21 = vsyncadd [#allocation3], 0
      %s22 = sshll.u32 %s0, 4
      %s23 = int_to_ptr.hbm [resolvable:$true] %s22
      %s24 = sshll.u32 [#allocation2], 4
      %s25 = int_to_ptr.vmem [resolvable:$true] %s24
      %30 = dma.hbm_to_vmem [thread:$0]  %s23, 256, %s25, [#allocation3], 128, 128, 8
    $region5: #{tpu_custom_call.1} parent=1 // pred_fallthru
      _
    // Predicated region
    $region6: #{tpu_custom_call.1} parent=1 // pred_check
      _
    $region7: #{tpu_custom_call.1} parent=1 // pred_check_branch
      %32 = sbr.rel (0) target = $region9
    $region8: #{tpu_custom_call.1} parent=1 // pred_region
      %34 = vsyncadd [#allocation6], 0
      %s35 = sshll.u32 %s1, 4
      %s36 = int_to_ptr.hbm [resolvable:$true] %s35
      %s37 = sshll.u32 [#allocation5], 4
      %s38 = int_to_ptr.vmem [resolvable:$true] %s37
      %43 = dma.hbm_to_vmem [thread:$0]  %s36, 2048, %s38, [#allocation6], 128, 128, 8
    $region9: #{tpu_custom_call.1} parent=1 // pred_fallthru
      _
    // Predicated region
    $region10: #{tpu_custom_call.1} parent=1 // pred_check
      _
    $region11: #{tpu_custom_call.1} parent=1 // pred_check_branch
      %45 = sbr.rel (0) target = $region13
    $region12: #{tpu_custom_call.1} parent=1 // pred_region
      _
    $region13: #{tpu_custom_call.1} parent=1 // pred_fallthru
      _
    // Predicated region
    $region14: #{tpu_custom_call.1} parent=1 // pred_check
      _
    $region15: #{tpu_custom_call.1} parent=1 // pred_check_branch
      %47 = sbr.rel (0) target = $region17
    $region16: #{tpu_custom_call.1} parent=1 // pred_region
      %49 = vsyncadd [#allocation6], 0
      %s50 = sshll.u32 %s3, 4
      %s51 = int_to_ptr.hbm [resolvable:$true] %s50
      %s52 = sshll.u32 [#allocation7], 4
      %s53 = int_to_ptr.vmem [resolvable:$true] %s52
      %58 = dma.hbm_to_vmem [thread:$0]  %s51, 2048, %s53, [#allocation6], 128, 128, 8
    $region17: #{tpu_custom_call.1} parent=1 // pred_fallthru
      _
    // Predicated region
    $region18: #{tpu_custom_call.1} parent=1 // pred_check
      _
    $region19: #{tpu_custom_call.1} parent=1 // pred_check_branch
      %60 = sbr.rel (0) target = $region21
    $region20: #{tpu_custom_call.1} parent=1 // pred_region
      _
    $region21: #{tpu_custom_call.1} parent=1 // pred_fallthru
      _
    // Predicated region
    $region22: #{tpu_custom_call.1} parent=1 // pred_check
      _
    $region23: #{tpu_custom_call.1} parent=1 // pred_check_branch
      %62 = sbr.rel (0) target = $region25
    $region24: #{tpu_custom_call.1} parent=1 // pred_region
      %64 = vsyncadd [#allocation9], 0
      %s65 = sshll.u32 %s5, 4
      %s66 = int_to_ptr.hbm [resolvable:$true] %s65
      %s67 = sshll.u32 [#allocation8], 4
      %s68 = int_to_ptr.vmem [resolvable:$true] %s67
      %73 = dma.hbm_to_vmem [thread:$0]  %s66, 2048, %s68, [#allocation9], 128, 128, 8
    $region25: #{tpu_custom_call.1} parent=1 // pred_fallthru
      _
    // Predicated region
    $region26: #{tpu_custom_call.1} parent=1 // pred_check
      _
    $region27: #{tpu_custom_call.1} parent=1 // pred_check_branch
      %75 = sbr.rel (0) target = $region29
    $region28: #{tpu_custom_call.1} parent=1 // pred_region
      _
    $region29: #{tpu_custom_call.1} parent=1 // pred_fallthru
      _
    // Predicated region
    $region30: #{tpu_custom_call.1} parent=1 // pred_check
      _
    $region31: #{tpu_custom_call.1} parent=1 // pred_check_branch
      %77 = sbr.rel (0) target = $region33
    $region32: #{tpu_custom_call.1} parent=1 // pred_region
      _
    $region33: #{tpu_custom_call.1} parent=1 // pred_fallthru
      _
    // Predicated region
    $region34: #{tpu_custom_call.1} parent=1 // pred_check
      _
    $region35: #{tpu_custom_call.1} parent=1 // pred_check_branch
      %79 = sbr.rel (0) target = $region37
    $region36: #{tpu_custom_call.1} parent=1 // pred_region
      _
    $region37: #{tpu_custom_call.1} parent=1 // pred_fallthru
      _
    // Predicated region
    $region38: #{tpu_custom_call.1} parent=1 // pred_check
      _
    $region39: #{tpu_custom_call.1} parent=1 // pred_check_branch
      %81 = sbr.rel (0) target = $region41
    $region40: #{tpu_custom_call.1} parent=1 // pred_region
      %83 = dma.done [#allocation3], 256
    $region41: #{tpu_custom_call.1} parent=1 // pred_fallthru
      _
    // Predicated region
    $region42: #{tpu_custom_call.1} parent=1 // pred_check
      _
    $region43: #{tpu_custom_call.1} parent=1 // pred_check_branch
      %85 = sbr.rel (0) target = $region45
    $region44: #{tpu_custom_call.1} parent=1 // pred_region
      %87 = dma.done [#allocation6], 2048
    $region45: #{tpu_custom_call.1} parent=1 // pred_fallthru
      _
    // Predicated region
    $region46: #{tpu_custom_call.1} parent=1 // pred_check
      _
    $region47: #{tpu_custom_call.1} parent=1 // pred_check_branch
      %89 = sbr.rel (0) target = $region49
    $region48: #{tpu_custom_call.1} parent=1 // pred_region
      %91 = dma.done [#allocation6], 2048
    $region49: #{tpu_custom_call.1} parent=1 // pred_fallthru
      _
    // Predicated region
    $region50: #{tpu_custom_call.1} parent=1 // pred_check
      _
    $region51: #{tpu_custom_call.1} parent=1 // pred_check_branch
      %93 = sbr.rel (0) target = $region53
    $region52: #{tpu_custom_call.1} parent=1 // pred_region
      %95 = dma.done [#allocation9], 2048
    $region53: #{tpu_custom_call.1} parent=1 // pred_fallthru
      _
    %v96 = vld [vmem:[#allocation2] sm:$0xff]
    %v97 = vld [vmem:[#allocation2 + $0x8] sm:$0xff]
    %v98 = vld [vmem:[#allocation5] sm:$0xff]
    %v99 = vld [vmem:[#allocation5 + $0x8] sm:$0xff]
    %v100 = vld [vmem:[#allocation5 + $0x10] sm:$0xff]
    %v101 = vld [vmem:[#allocation5 + $0x18] sm:$0xff]
    %v102 = vld [vmem:[#allocation5 + $0x20] sm:$0xff]
    %v103 = vld [vmem:[#allocation5 + $0x28] sm:$0xff]
    %v104 = vld [vmem:[#allocation5 + $0x30] sm:$0xff]
    %v105 = vld [vmem:[#allocation5 + $0x38] sm:$0xff]
    %v106 = vld [vmem:[#allocation5 + $0x40] sm:$0xff]
    %v107 = vld [vmem:[#allocation5 + $0x48] sm:$0xff]
    %v108 = vld [vmem:[#allocation5 + $0x50] sm:$0xff]
    %v109 = vld [vmem:[#allocation5 + $0x58] sm:$0xff]
    %v110 = vld [vmem:[#allocation5 + $0x60] sm:$0xff]
    %v111 = vld [vmem:[#allocation5 + $0x68] sm:$0xff]
    %v112 = vld [vmem:[#allocation5 + $0x70] sm:$0xff]
    %v113 = vld [vmem:[#allocation5 + $0x78] sm:$0xff]
    %v114 = vld [vmem:[%s2] sm:$0x1]
    %v116 = vperm.slane %v114, 0
    %118 = vmatpush.msra.mxu0 %v113
    %119 = vmatpush.msra.mxu0 %v112
    %120 = vmatpush.msra.mxu0 %v111
    %121 = vmatpush.msra.mxu0 %v110
    %122 = vmatpush.msra.mxu0 %v109
    %123 = vmatpush.msra.mxu0 %v108
    %124 = vmatpush.msra.mxu0 %v107
    %125 = vmatpush.msra.mxu0 %v106
    %126 = vmatpush.msra.mxu0 %v105
    %127 = vmatpush.msra.mxu0 %v104
    %128 = vmatpush.msra.mxu0 %v103
    %129 = vmatpush.msra.mxu0 %v102
    %130 = vmatpush.msra.mxu0 %v101
    %131 = vmatpush.msra.mxu0 %v100
    %132 = vmatpush.msra.mxu0 %v99
    %133 = vmatpush.msra.mxu0 %v98
    %134 = vmatmul.f32.gmra.mxu0 %v96
    %v135 = vpop.f32.mrf.mxu0
    %v136 = vadd.f32 %v116, %v135
    %137 = vmatmul.f32.gmra.mxu0 %v97
    %v138 = vpop.f32.mrf.mxu0
    %v139 = vadd.f32 %v116, %v138
    %140 = vdwg.mxu0
    %v141 = vmul.f32 %v136, 0.5
    %v142 = vmul.f32 %v139, 0.5
    %v143 = vmul.f32 %v136, 0.70710677
    %v144 = vmul.f32 %v139, 0.70710677
    %v145 = vmul.f32 %v143, %v143
    %v146 = vmin.f32 16.0, %v145
    %v147 = vmul.f32 %v146, 2.1237322e-06
    %v148 = vadd.f32 %v147, 0.00028619796
    %v149 = vmul.f32 %v146, %v148
    %v150 = vadd.f32 %v149, 0.0036580483
    %v151 = vmul.f32 %v146, %v150
    %v152 = vadd.f32 %v151, 0.05243302
    %v153 = vmul.f32 %v146, %v152
    %v154 = vadd.f32 %v153, 0.18741608
    %v155 = vmul.f32 %v146, %v154
    %v156 = vadd.f32 %v155, 1.1283791
    %v157 = vmul.f32 %v143, %v156
    %v158 = vmul.f32 %v146, 3.8918573e-05
    %v159 = vadd.f32 %v158, 0.001143296
    %v160 = vmul.f32 %v146, %v159
    %v161 = vadd.f32 %v160, 0.014752088
    %v162 = vmul.f32 %v146, %v161
    %v163 = vadd.f32 %v162, 0.112945676
    %v164 = vmul.f32 %v146, %v163
    %v165 = vadd.f32 %v164, 0.4994258
    %v166 = vmul.f32 %v146, %v165
    %v167 = vadd.f32 %v166, 1.0
    %v168 = vrcp.pop %v167
    %v169 = vmul.f32 %v167, %v168
    %v170 = vsub.f32 1.0, %v169
    %v171 = vmul.f32 %v168, %v170
    %v172 = vadd.f32 %v168, %v171
    %vm173 = vweird.f32 %v167
    %vm174 = vweird.f32 %v168
    %vm175 = vmor %vm173, %vm174
    %v176 = vsel %vm175, %v168, %v172
    %v177 = vand.u32 2147483647, %v167
    %vm178 = vcmp.eq.f32.partialorder %v177, 8.507059e+37
    %v179 = vand.u32 %v167, 2147483648
    %v180 = vor.u32 1.1754944e-38, %v179
    %v181 = vsel %vm178, %v180, %v176
    %v182 = vmul.f32 %v157, %v181
    %v183 = vmin.f32 %v182, 1.0
    %v184 = vmax.f32 %v183, -1.0
    %v185 = vmul.f32 %v144, %v144
    %v186 = vmin.f32 16.0, %v185
    %v187 = vmul.f32 %v186, 2.1237322e-06
    %v188 = vadd.f32 %v187, 0.00028619796
    %v189 = vmul.f32 %v186, %v188
    %v190 = vadd.f32 %v189, 0.0036580483
    %v191 = vmul.f32 %v186, %v190
    %v192 = vadd.f32 %v191, 0.05243302
    %v193 = vmul.f32 %v186, %v192
    %v194 = vadd.f32 %v193, 0.18741608
    %v195 = vmul.f32 %v186, %v194
    %v196 = vadd.f32 %v195, 1.1283791
    %v197 = vmul.f32 %v144, %v196
    %v198 = vmul.f32 %v186, 3.8918573e-05
    %v199 = vadd.f32 %v198, 0.001143296
    %v200 = vmul.f32 %v186, %v199
    %v201 = vadd.f32 %v200, 0.014752088
    %v202 = vmul.f32 %v186, %v201
    %v203 = vadd.f32 %v202, 0.112945676
    %v204 = vmul.f32 %v186, %v203
    %v205 = vadd.f32 %v204, 0.4994258
    %v206 = vmul.f32 %v186, %v205
    %v207 = vadd.f32 %v206, 1.0
    %v208 = vrcp.pop %v207
    %v209 = vmul.f32 %v207, %v208
    %v210 = vsub.f32 1.0, %v209
    %v211 = vmul.f32 %v208, %v210
    %v212 = vadd.f32 %v208, %v211
    %vm213 = vweird.f32 %v207
    %vm214 = vweird.f32 %v208
    %vm215 = vmor %vm213, %vm214
    %v216 = vsel %vm215, %v208, %v212
    %v217 = vand.u32 2147483647, %v207
    %vm218 = vcmp.eq.f32.partialorder %v217, 8.507059e+37
    %v219 = vand.u32 %v207, 2147483648
    %v220 = vor.u32 1.1754944e-38, %v219
    %v221 = vsel %vm218, %v220, %v216
    %v222 = vmul.f32 %v197, %v221
    %v223 = vmin.f32 %v222, 1.0
    %v224 = vmax.f32 %v223, -1.0
    %v225 = vadd.f32 %v184, 1.0
    %v226 = vadd.f32 %v224, 1.0
    %v227 = vmul.f32 %v141, %v225
    %v228 = vmul.f32 %v142, %v226
    %v229 = vld [vmem:[#allocation7] sm:$0xff]
    %v230 = vld [vmem:[#allocation7 + $0x8] sm:$0xff]
    %v231 = vld [vmem:[#allocation7 + $0x10] sm:$0xff]
    %v232 = vld [vmem:[#allocation7 + $0x18] sm:$0xff]
    %v233 = vld [vmem:[#allocation7 + $0x20] sm:$0xff]
    %v234 = vld [vmem:[#allocation7 + $0x28] sm:$0xff]
    %v235 = vld [vmem:[#allocation7 + $0x30] sm:$0xff]
    %v236 = vld [vmem:[#allocation7 + $0x38] sm:$0xff]
    %v237 = vld [vmem:[#allocation7 + $0x40] sm:$0xff]
    %v238 = vld [vmem:[#allocation7 + $0x48] sm:$0xff]
    %v239 = vld [vmem:[#allocation7 + $0x50] sm:$0xff]
    %v240 = vld [vmem:[#allocation7 + $0x58] sm:$0xff]
    %v241 = vld [vmem:[#allocation7 + $0x60] sm:$0xff]
    %v242 = vld [vmem:[#allocation7 + $0x68] sm:$0xff]
    %v243 = vld [vmem:[#allocation7 + $0x70] sm:$0xff]
    %v244 = vld [vmem:[#allocation7 + $0x78] sm:$0xff]
    %v245 = vld [vmem:[%s4] sm:$0x1]
    %v247 = vperm.slane %v245, 0
    %249 = vmatpush.msra.mxu0 %v244
    %250 = vmatpush.msra.mxu0 %v243
    %251 = vmatpush.msra.mxu0 %v242
    %252 = vmatpush.msra.mxu0 %v241
    %253 = vmatpush.msra.mxu0 %v240
    %254 = vmatpush.msra.mxu0 %v239
    %255 = vmatpush.msra.mxu0 %v238
    %256 = vmatpush.msra.mxu0 %v237
    %257 = vmatpush.msra.mxu0 %v236
    %258 = vmatpush.msra.mxu0 %v235
    %259 = vmatpush.msra.mxu0 %v234
    %260 = vmatpush.msra.mxu0 %v233
    %261 = vmatpush.msra.mxu0 %v232
    %262 = vmatpush.msra.mxu0 %v231
    %263 = vmatpush.msra.mxu0 %v230
    %264 = vmatpush.msra.mxu0 %v229
    %265 = vmatmul.f32.gmra.mxu0 %v227
    %v266 = vpop.f32.mrf.mxu0
    %v267 = vadd.f32 %v247, %v266
    %268 = vmatmul.f32.gmra.mxu0 %v228
    %v269 = vpop.f32.mrf.mxu0
    %v270 = vadd.f32 %v247, %v269
    %271 = vdwg.mxu0
    %v272 = vmul.f32 %v267, 0.5
    %v273 = vmul.f32 %v270, 0.5
    %v274 = vmul.f32 %v267, 0.70710677
    %v275 = vmul.f32 %v270, 0.70710677
    %v276 = vmul.f32 %v274, %v274
    %v277 = vmin.f32 16.0, %v276
    %v278 = vmul.f32 %v277, 2.1237322e-06
    %v279 = vadd.f32 %v278, 0.00028619796
    %v280 = vmul.f32 %v277, %v279
    %v281 = vadd.f32 %v280, 0.0036580483
    %v282 = vmul.f32 %v277, %v281
    %v283 = vadd.f32 %v282, 0.05243302
    %v284 = vmul.f32 %v277, %v283
    %v285 = vadd.f32 %v284, 0.18741608
    %v286 = vmul.f32 %v277, %v285
    %v287 = vadd.f32 %v286, 1.1283791
    %v288 = vmul.f32 %v274, %v287
    %v289 = vmul.f32 %v277, 3.8918573e-05
    %v290 = vadd.f32 %v289, 0.001143296
    %v291 = vmul.f32 %v277, %v290
    %v292 = vadd.f32 %v291, 0.014752088
    %v293 = vmul.f32 %v277, %v292
    %v294 = vadd.f32 %v293, 0.112945676
    %v295 = vmul.f32 %v277, %v294
    %v296 = vadd.f32 %v295, 0.4994258
    %v297 = vmul.f32 %v277, %v296
    %v298 = vadd.f32 %v297, 1.0
    %v299 = vrcp.pop %v298
    %v300 = vmul.f32 %v298, %v299
    %v301 = vsub.f32 1.0, %v300
    %v302 = vmul.f32 %v299, %v301
    %v303 = vadd.f32 %v299, %v302
    %vm304 = vweird.f32 %v298
    %vm305 = vweird.f32 %v299
    %vm306 = vmor %vm304, %vm305
    %v307 = vsel %vm306, %v299, %v303
    %v308 = vand.u32 2147483647, %v298
    %vm309 = vcmp.eq.f32.partialorder %v308, 8.507059e+37
    %v310 = vand.u32 %v298, 2147483648
    %v311 = vor.u32 1.1754944e-38, %v310
    %v312 = vsel %vm309, %v311, %v307
    %v313 = vmul.f32 %v288, %v312
    %v314 = vmin.f32 %v313, 1.0
    %v315 = vmax.f32 %v314, -1.0
    %v316 = vmul.f32 %v275, %v275
    %v317 = vmin.f32 16.0, %v316
    %v318 = vmul.f32 %v317, 2.1237322e-06
    %v319 = vadd.f32 %v318, 0.00028619796
    %v320 = vmul.f32 %v317, %v319
    %v321 = vadd.f32 %v320, 0.0036580483
    %v322 = vmul.f32 %v317, %v321
    %v323 = vadd.f32 %v322, 0.05243302
    %v324 = vmul.f32 %v317, %v323
    %v325 = vadd.f32 %v324, 0.18741608
    %v326 = vmul.f32 %v317, %v325
    %v327 = vadd.f32 %v326, 1.1283791
    %v328 = vmul.f32 %v275, %v327
    %v329 = vmul.f32 %v317, 3.8918573e-05
    %v330 = vadd.f32 %v329, 0.001143296
    %v331 = vmul.f32 %v317, %v330
    %v332 = vadd.f32 %v331, 0.014752088
    %v333 = vmul.f32 %v317, %v332
    %v334 = vadd.f32 %v333, 0.112945676
    %v335 = vmul.f32 %v317, %v334
    %v336 = vadd.f32 %v335, 0.4994258
    %v337 = vmul.f32 %v317, %v336
    %v338 = vadd.f32 %v337, 1.0
    %v339 = vrcp.pop %v338
    %v340 = vmul.f32 %v338, %v339
    %v341 = vsub.f32 1.0, %v340
    %v342 = vmul.f32 %v339, %v341
    %v343 = vadd.f32 %v339, %v342
    %vm344 = vweird.f32 %v338
    %vm345 = vweird.f32 %v339
    %vm346 = vmor %vm344, %vm345
    %v347 = vsel %vm346, %v339, %v343
    %v348 = vand.u32 2147483647, %v338
    %vm349 = vcmp.eq.f32.partialorder %v348, 8.507059e+37
    %v350 = vand.u32 %v338, 2147483648
    %v351 = vor.u32 1.1754944e-38, %v350
    %v352 = vsel %vm349, %v351, %v347
    %v353 = vmul.f32 %v328, %v352
    %v354 = vmin.f32 %v353, 1.0
    %v355 = vmax.f32 %v354, -1.0
    %v356 = vadd.f32 %v315, 1.0
    %v357 = vadd.f32 %v355, 1.0
    %v358 = vmul.f32 %v272, %v356
    %v359 = vmul.f32 %v273, %v357
    %v360 = vld [vmem:[#allocation8] sm:$0xff]
    %v361 = vld [vmem:[#allocation8 + $0x8] sm:$0xff]
    %v362 = vld [vmem:[#allocation8 + $0x10] sm:$0xff]
    %v363 = vld [vmem:[#allocation8 + $0x18] sm:$0xff]
    %v364 = vld [vmem:[#allocation8 + $0x20] sm:$0xff]
    %v365 = vld [vmem:[#allocation8 + $0x28] sm:$0xff]
    %v366 = vld [vmem:[#allocation8 + $0x30] sm:$0xff]
    %v367 = vld [vmem:[#allocation8 + $0x38] sm:$0xff]
    %v368 = vld [vmem:[#allocation8 + $0x40] sm:$0xff]
    %v369 = vld [vmem:[#allocation8 + $0x48] sm:$0xff]
    %v370 = vld [vmem:[#allocation8 + $0x50] sm:$0xff]
    %v371 = vld [vmem:[#allocation8 + $0x58] sm:$0xff]
    %v372 = vld [vmem:[#allocation8 + $0x60] sm:$0xff]
    %v373 = vld [vmem:[#allocation8 + $0x68] sm:$0xff]
    %v374 = vld [vmem:[#allocation8 + $0x70] sm:$0xff]
    %v375 = vld [vmem:[#allocation8 + $0x78] sm:$0xff]
    %v376 = vld [vmem:[%s6] sm:$0x1]
    %v378 = vperm.slane %v376, 0
    %380 = vmatpush.msra.mxu0 %v375
    %381 = vmatpush.msra.mxu0 %v374
    %382 = vmatpush.msra.mxu0 %v373
    %383 = vmatpush.msra.mxu0 %v372
    %384 = vmatpush.msra.mxu0 %v371
    %385 = vmatpush.msra.mxu0 %v370
    %386 = vmatpush.msra.mxu0 %v369
    %387 = vmatpush.msra.mxu0 %v368
    %388 = vmatpush.msra.mxu0 %v367
    %389 = vmatpush.msra.mxu0 %v366
    %390 = vmatpush.msra.mxu0 %v365
    %391 = vmatpush.msra.mxu0 %v364
    %392 = vmatpush.msra.mxu0 %v363
    %393 = vmatpush.msra.mxu0 %v362
    %394 = vmatpush.msra.mxu0 %v361
    %395 = vmatpush.msra.mxu0 %v360
    %396 = vmatmul.f32.gmra.mxu0 %v358
    %v397 = vpop.f32.mrf.mxu0
    %v398 = vadd.f32 %v378, %v397
    %399 = vmatmul.f32.gmra.mxu0 %v359
    %v400 = vpop.f32.mrf.mxu0
    %v401 = vadd.f32 %v378, %v400
    %402 = vdwg.mxu0
    %v403 = vmul.f32 %v398, 0.5
    %v404 = vmul.f32 %v401, 0.5
    %v405 = vmul.f32 %v398, 0.70710677
    %v406 = vmul.f32 %v401, 0.70710677
    %v407 = vmul.f32 %v405, %v405
    %v408 = vmin.f32 16.0, %v407
    %v409 = vmul.f32 %v408, 2.1237322e-06
    %v410 = vadd.f32 %v409, 0.00028619796
    %v411 = vmul.f32 %v408, %v410
    %v412 = vadd.f32 %v411, 0.0036580483
    %v413 = vmul.f32 %v408, %v412
    %v414 = vadd.f32 %v413, 0.05243302
    %v415 = vmul.f32 %v408, %v414
    %v416 = vadd.f32 %v415, 0.18741608
    %v417 = vmul.f32 %v408, %v416
    %v418 = vadd.f32 %v417, 1.1283791
    %v419 = vmul.f32 %v405, %v418
    %v420 = vmul.f32 %v408, 3.8918573e-05
    %v421 = vadd.f32 %v420, 0.001143296
    %v422 = vmul.f32 %v408, %v421
    %v423 = vadd.f32 %v422, 0.014752088
    %v424 = vmul.f32 %v408, %v423
    %v425 = vadd.f32 %v424, 0.112945676
    %v426 = vmul.f32 %v408, %v425
    %v427 = vadd.f32 %v426, 0.4994258
    %v428 = vmul.f32 %v408, %v427
    %v429 = vadd.f32 %v428, 1.0
    %v430 = vrcp.pop %v429
    %v431 = vmul.f32 %v429, %v430
    %v432 = vsub.f32 1.0, %v431
    %v433 = vmul.f32 %v430, %v432
    %v434 = vadd.f32 %v430, %v433
    %vm435 = vweird.f32 %v429
    %vm436 = vweird.f32 %v430
    %vm437 = vmor %vm435, %vm436
    %v438 = vsel %vm437, %v430, %v434
    %v439 = vand.u32 2147483647, %v429
    %vm440 = vcmp.eq.f32.partialorder %v439, 8.507059e+37
    %v441 = vand.u32 %v429, 2147483648
    %v442 = vor.u32 1.1754944e-38, %v441
    %v443 = vsel %vm440, %v442, %v438
    %v444 = vmul.f32 %v419, %v443
    %v445 = vmin.f32 %v444, 1.0
    %v446 = vmax.f32 %v445, -1.0
    %v447 = vmul.f32 %v406, %v406
    %v448 = vmin.f32 16.0, %v447
    %v449 = vmul.f32 %v448, 2.1237322e-06
    %v450 = vadd.f32 %v449, 0.00028619796
    %v451 = vmul.f32 %v448, %v450
    %v452 = vadd.f32 %v451, 0.0036580483
    %v453 = vmul.f32 %v448, %v452
    %v454 = vadd.f32 %v453, 0.05243302
    %v455 = vmul.f32 %v448, %v454
    %v456 = vadd.f32 %v455, 0.18741608
    %v457 = vmul.f32 %v448, %v456
    %v458 = vadd.f32 %v457, 1.1283791
    %v459 = vmul.f32 %v406, %v458
    %v460 = vmul.f32 %v448, 3.8918573e-05
    %v461 = vadd.f32 %v460, 0.001143296
    %v462 = vmul.f32 %v448, %v461
    %v463 = vadd.f32 %v462, 0.014752088
    %v464 = vmul.f32 %v448, %v463
    %v465 = vadd.f32 %v464, 0.112945676
    %v466 = vmul.f32 %v448, %v465
    %v467 = vadd.f32 %v466, 0.4994258
    %v468 = vmul.f32 %v448, %v467
    %v469 = vadd.f32 %v468, 1.0
    %v470 = vrcp.pop %v469
    %v471 = vmul.f32 %v469, %v470
    %v472 = vsub.f32 1.0, %v471
    %v473 = vmul.f32 %v470, %v472
    %v474 = vadd.f32 %v470, %v473
    %vm475 = vweird.f32 %v469
    %vm476 = vweird.f32 %v470
    %vm477 = vmor %vm475, %vm476
    %v478 = vsel %vm477, %v470, %v474
    %v479 = vand.u32 2147483647, %v469
    %vm480 = vcmp.eq.f32.partialorder %v479, 8.507059e+37
    %v481 = vand.u32 %v469, 2147483648
    %v482 = vor.u32 1.1754944e-38, %v481
    %v483 = vsel %vm480, %v482, %v478
    %v484 = vmul.f32 %v459, %v483
    %v485 = vmin.f32 %v484, 1.0
    %v486 = vmax.f32 %v485, -1.0
    %v487 = vadd.f32 %v446, 1.0
    %v488 = vadd.f32 %v486, 1.0
    %v489 = vmul.f32 %v403, %v487
    %v490 = vmul.f32 %v404, %v488
    %v491 = vadd.f32 %v489, %v96
    %v492 = vadd.f32 %v490, %v97
    %493 = vadd.xlane.f32.xlu0 %v491
    %v494 = vpop.xlane.xlu0 %493
    %495 = vadd.xlane.f32.xlu0 %v492
    %v496 = vpop.xlane.xlu0 %495
    %v497 = vmul.f32 %v494, 0.03125
    %v498 = vmul.f32 %v496, 0.03125
    %v499 = vsub.f32 %v491, %v497
    %v500 = vsub.f32 %v492, %v498
    %v501 = vlaneseq
    %v502 = vand.u32 %v501, 127
    %vm503 = vcmp.lt.s32.totalorder %v502, 32
    %v504 = vsel %vm503, %v499, 0.0
    %v505 = vsel %vm503, %v500, 0.0
    %v506 = vmul.f32 %v504, %v504
    %v507 = vmul.f32 %v505, %v505
    %508 = vadd.xlane.f32.xlu0 %v506
    %v509 = vpop.xlane.xlu0 %508
    %510 = vadd.xlane.f32.xlu0 %v507
    %v511 = vpop.xlane.xlu0 %510
    %v512 = vmul.f32 %v509, 0.03125
    %v513 = vmul.f32 %v511, 0.03125
    %v514 = vadd.f32 %v512, 1e-05
    %v515 = vadd.f32 %v513, 1e-05
    %v516 = vrsqrt.pop %v514
    %v517 = vmul.f32 %v516, %v514
    %v518 = vmul.f32 %v517, %v516
    %v519 = vmul.f32 0.5, %v518
    %v520 = vsub.f32 1.5, %v519
    %v521 = vmul.f32 %v516, %v520
    %vm522 = vweird.f32 %v514
    %vm523 = vweird.f32 %v516
    %vm524 = vmor %vm522, %vm523
    %v525 = vsel %vm524, %v516, %v521
    %v526 = vrsqrt.pop %v515
    %v527 = vmul.f32 %v526, %v515
    %v528 = vmul.f32 %v527, %v526
    %v529 = vmul.f32 0.5, %v528
    %v530 = vsub.f32 1.5, %v529
    %v531 = vmul.f32 %v526, %v530
    %vm532 = vweird.f32 %v515
    %vm533 = vweird.f32 %v526
    %vm534 = vmor %vm532, %vm533
    %v535 = vsel %vm534, %v526, %v531
    %v536 = vmul.f32 %v504, %v525
    %v537 = vmul.f32 %v505, %v535
    %v538 = vld [vmem:[%s7] sm:$0x1]
    %v540 = vperm.slane %v538, 0
    %v542 = vmul.f32 %v536, %v540
    %v543 = vmul.f32 %v537, %v540
    %v544 = vld [vmem:[%s8] sm:$0x1]
    %v546 = vperm.slane %v544, 0
    %v548 = vadd.f32 %v542, %v546
    %v549 = vadd.f32 %v543, %v546
    %550 = vst [vmem:[#allocation10] sm:$0xff] %v548
    %551 = vst [vmem:[#allocation10 + $0x8] sm:$0xff] %v549
    // Predicated region
    $region54: #{tpu_custom_call.1} parent=1 // pred_check
      _
    $region55: #{tpu_custom_call.1} parent=1 // pred_check_branch
      %553 = sbr.rel (0) target = $region57
    $region56: #{tpu_custom_call.1} parent=1 // pred_region
      %555 = vsyncadd [#allocation4], 0
      %s556 = sshll.u32 [#allocation10], 4
      %s557 = int_to_ptr.vmem [resolvable:$true] %s556
      %s558 = sshll.u32 %s9, 4
      %s559 = int_to_ptr.hbm [resolvable:$true] %s558
      %564 = dma.vmem_to_hbm [thread:$0]  %s557, 256, %s559, [#allocation4], 128, 128, 8
    $region57: #{tpu_custom_call.1} parent=1 // pred_fallthru
      _
    // Predicated region
    $region58: #{tpu_custom_call.1} parent=1 // pred_check
      _
    $region59: #{tpu_custom_call.1} parent=1 // pred_check_branch
      %566 = sbr.rel (0) target = $region61
    $region60: #{tpu_custom_call.1} parent=1 // pred_region
      %568 = dma.done [#allocation4], 256
    $region61: #{tpu_custom_call.1} parent=1 // pred_fallthru
      _
    %569 = vsyncpa [#allocation3], 1
    %570 = vsyncpa [#allocation6], 1
    %571 = vsyncpa [#allocation9], 1
    %572 = vsyncpa [#allocation4], 1

</llo_original>
